<compile_context>
chip_gen: v7x
topology: tpu7x:2x2x1
jax: 0.10.0
libtpu: 0.0.40
codegen_flags: <defaults>
</compile_context>

<pallas_src>
from functools import partial

import jax
import jax.numpy as jnp
from jax.experimental import pallas as pl
from jax.experimental.pallas import tpu as pltpu

LANE = 128  # TPU vreg lane width


def gmm_head_kernel(x_ref, w0_ref, b0_ref, w1_ref, b1_ref, w2_ref, b2_ref,
                    wh_ref, bh_ref, out_ref, *, num_modes, output_dim):
    """One batch tile of the eval-mode GMMHead forward, feature-major layout.

    x_ref:  (input_dim, TB)   bf16, batch on lanes
    w*_ref: (out_feat, in_feat) bf16 (y = W @ h), b*_ref: (out_feat, 1) f32
    wh_ref/bh_ref: fused [mean_layer ; logits_layer] head (rows padded to 8)
    out_ref: (output_dim, TB) f32
    """
    cd = jnp.bfloat16
    x = x_ref[...]                                            # (in_dim, TB)

    # --- shared MLP: Linear -> ReLU -> Linear -> ReLU -> Linear (f32 accum) ---
    h = jnp.dot(w0_ref[...], x, preferred_element_type=jnp.float32) + b0_ref[...]
    h = jnp.maximum(h, 0.0).astype(cd)
    h = jnp.dot(w1_ref[...], h, preferred_element_type=jnp.float32) + b1_ref[...]
    h = jnp.maximum(h, 0.0).astype(cd)
    s = jnp.dot(w2_ref[...], h, preferred_element_type=jnp.float32) + b2_ref[...]
    s = s.astype(cd)

    # --- fused head: one matmul producing [means_pre ; logits] on sublanes ---
    md = num_modes * output_dim
    y = jnp.dot(wh_ref[...], s, preferred_element_type=jnp.float32) + bh_ref[...]
    means = jnp.tanh(y[:md, :])                               # (modes*D, TB)
    logits = y[md:md + num_modes, :]                          # (modes, TB)

    # --- numerically stable softmax over modes (sublane axis); EUP divide ---
    lmax = jnp.max(logits, axis=0, keepdims=True)
    e = jnp.exp(logits - lmax)
    inv = pl.reciprocal(jnp.sum(e, axis=0, keepdims=True), approx=True)
    probs = e * inv                                           # (modes, TB)

    # --- mixture mean: sum_k probs[k] * means[k*D:(k+1)*D] (static slices) ---
    acc = jnp.zeros(out_ref.shape, jnp.float32)
    for k in range(num_modes):
        acc = acc + probs[k:k + 1, :] * means[k * output_dim:(k + 1) * output_dim, :]

    out_ref[...] = acc.astype(out_ref.dtype)


def _round_up(a, m):
    return ((a + m - 1) // m) * m


def _resident(shape):
    # Full-array block with a constant index_map: same block every grid step,
    # so the (tiny) weights/biases stay VMEM-resident across the batch grid.
    return pl.BlockSpec(shape, lambda *_: (0,) * len(shape))


def gmm_head_forward_fm(x_t, params, *, num_modes, output_dim,
                        block_b=8192, min_parallel_tiles=2, x_buffer_count=2):
    """Feature-major (lane-dense) forward.

    x_t: (input_dim, B)  ->  returns (output_dim, B), f32.
    """
    in_dim, B = x_t.shape

    # Balanced batch tiling along the lane axis: padding waste bounded by one
    # tile's rounding; force >= 2 (even) tiles when B allows so the "parallel"
    # grid axis actually shards across both v7x TensorCores.
    num_tiles = pl.cdiv(B, block_b)
    if B >= min_parallel_tiles * LANE:
        num_tiles = max(num_tiles, min_parallel_tiles)
    if num_tiles > 1 and num_tiles % 2:
        num_tiles += 1
    tb = _round_up(pl.cdiv(B, num_tiles), LANE)
    b_pad = tb * num_tiles

    # Stream x in bf16 (f32 accumulation happens inside the kernel).
    x_t = x_t.astype(jnp.bfloat16)
    if b_pad != B:
        x_t = jnp.pad(x_t, ((0, 0), (0, b_pad - B)))

    # Weights transposed to (out_features, in_features) = y = W @ h layout,
    # streamed as bf16; biases as (out_features, 1) f32.
    def wt(name):
        return params[name].T.astype(jnp.bfloat16)

    def bt(name):
        return params[name].T.astype(jnp.float32)             # (out_feat, 1)

    # Fused head: [mean_layer ; logits_layer], rows padded to a multiple of 8.
    wh_t = jnp.concatenate([params["wm"], params["wl"]], axis=1).T
    bh_t = jnp.concatenate([params["bm"], params["bl"]], axis=1).T
    head_rows = num_modes * output_dim + num_modes
    pad = _round_up(head_rows, 8) - head_rows
    if pad:
        wh_t = jnp.pad(wh_t, ((0, pad), (0, 0)))
        bh_t = jnp.pad(bh_t, ((0, pad), (0, 0)))
    wh_t = wh_t.astype(jnp.bfloat16)
    bh_t = bh_t.astype(jnp.float32)

    operands = (x_t, wt("w0"), bt("b0"), wt("w1"), bt("b1"),
                wt("w2"), bt("b2"), wh_t, bh_t)

    # x tile spec; deeper buffering is a cheap knob if x DMA is still exposed
    # on v7x after enlarging tiles.
    if x_buffer_count == 2:
        x_spec = pl.BlockSpec((in_dim, tb), lambda i: (0, i))
    else:
        x_spec = pl.BlockSpec((in_dim, tb), lambda i: (0, i),
                              pipeline_mode=pl.Buffered(x_buffer_count))

    out = pl.pallas_call(
        partial(gmm_head_kernel, num_modes=num_modes, output_dim=output_dim),
        out_shape=jax.ShapeDtypeStruct((output_dim, b_pad), jnp.float32),
        grid=(num_tiles,),
        in_specs=[x_spec] + [_resident(op.shape) for op in operands[1:]],
        out_specs=pl.BlockSpec((output_dim, tb), lambda i: (0, i)),
        compiler_params=pltpu.CompilerParams(dimension_semantics=("parallel",)),
    )(*operands)

    return out[:, :B] if b_pad != B else out


def gmm_head_forward(x, params, *, num_modes, output_dim, **kwargs):
    """Module-compatible API: x (B, input_dim) -> (B, output_dim).

    TODO(synk): if the surrounding model can produce x as (input_dim, B) and
    consume (output_dim, B), call gmm_head_forward_fm directly and drop these
    boundary transposes (they cost one extra HBM pass over x / out).
    """
    out_t = gmm_head_forward_fm(x.T, params, num_modes=num_modes,
                                output_dim=output_dim, **kwargs)
    return out_t.T


def init_linear(key, fan_in, fan_out):
    """PyTorch nn.Linear default init: U(-1/sqrt(fan_in), 1/sqrt(fan_in))."""
    kw, kb = jax.random.split(key)
    bound = 1.0 / jnp.sqrt(float(fan_in))
    w = jax.random.uniform(kw, (fan_in, fan_out), jnp.float32, -bound, bound)
    b = jax.random.uniform(kb, (1, fan_out), jnp.float32, -bound, bound)
    return w, b


def reference_forward(x, params, *, num_modes, output_dim):
    """Pure-JAX f32 reference of the eval-mode GMMHead forward (gmm.mean)."""
    h = jnp.maximum(x @ params["w0"] + params["b0"], 0.0)
    h = jnp.maximum(h @ params["w1"] + params["b1"], 0.0)
    s = h @ params["w2"] + params["b2"]
    means = jnp.tanh(s @ params["wm"] + params["bm"]).reshape(-1, num_modes, output_dim)
    logits = s @ params["wl"] + params["bl"]
    probs = jax.nn.softmax(logits, axis=-1)
    return jnp.sum(probs[:, :, None] * means, axis=1)


if __name__ == "__main__":
    # Small shapes consistent with the module; B=300 with block_b=128 exercises
    # the multi-tile batch grid (4 even tiles), batch padding, and the
    # feature-major (lane-dense) datapath.
    B = 300
    input_dim = 16
    hidden = 32
    output_dim = 8
    num_modes = 5

    key = jax.random.PRNGKey(0)
    kx, k0, k1, k2, km, kl = jax.random.split(key, 6)

    x = jax.random.normal(kx, (B, input_dim), jnp.float32)

    w0, b0 = init_linear(k0, input_dim, hidden)
    w1, b1 = init_linear(k1, hidden, hidden)
    w2, b2 = init_linear(k2, hidden, hidden)
    wm, bm = init_linear(km, hidden, output_dim * num_modes)
    wl, bl = init_linear(kl, hidden, num_modes)

    params = dict(w0=w0, b0=b0, w1=w1, b1=b1, w2=w2, b2=b2,
                  wm=wm, bm=bm, wl=wl, bl=bl)

    out = gmm_head_forward(x, params, num_modes=num_modes, output_dim=output_dim,
                           block_b=128)
    out = jax.block_until_ready(out)

    ref = reference_forward(x, params, num_modes=num_modes, output_dim=output_dim)
    assert out.shape == (B, output_dim)
    # Tolerance accounts for bf16 streaming of x/weights/activations and the
    # approx (EUP) reciprocal in the softmax denominator; outputs are tanh-
    # bounded so the absolute error stays small.
    max_err = float(jnp.max(jnp.abs(out - ref)))
    assert max_err < 5e-2, f"max abs error {max_err}"

    print("KERNEL_OK")
</pallas_src>

<mosaic_0001>
module attributes {stable_mosaic.version = 11 : i64} {
  func.func @gmm_head_kernel(%arg0: i32, %arg1: memref<16x128xbf16, #tpu.memory_space<vmem>>, %arg2: memref<32x16xbf16, #tpu.memory_space<vmem>>, %arg3: memref<32x1xf32, #tpu.memory_space<vmem>>, %arg4: memref<32x32xbf16, #tpu.memory_space<vmem>>, %arg5: memref<32x1xf32, #tpu.memory_space<vmem>>, %arg6: memref<32x32xbf16, #tpu.memory_space<vmem>>, %arg7: memref<32x1xf32, #tpu.memory_space<vmem>>, %arg8: memref<48x32xbf16, #tpu.memory_space<vmem>>, %arg9: memref<48x1xf32, #tpu.memory_space<vmem>>, %arg10: memref<8x128xf32, #tpu.memory_space<vmem>>) attributes {dimension_semantics = [#tpu.dimension_semantics<parallel>], iteration_bounds = array<i64: 4>, scalar_prefetch = 0 : i64, scratch_operands = 0 : i64, tpu.core_type = #tpu.core_type<tc>, window_params = [{transform_indices = @transform_0, window_bounds = array<i64: 16, 128>}, {pipeline_mode = #tpu.pipeline_mode<synchronous>, transform_indices = @transform_1, window_bounds = array<i64: 32, 16>}, {pipeline_mode = #tpu.pipeline_mode<synchronous>, transform_indices = @transform_2, window_bounds = array<i64: 32, 1>}, {pipeline_mode = #tpu.pipeline_mode<synchronous>, transform_indices = @transform_3, window_bounds = array<i64: 32, 32>}, {pipeline_mode = #tpu.pipeline_mode<synchronous>, transform_indices = @transform_4, window_bounds = array<i64: 32, 1>}, {pipeline_mode = #tpu.pipeline_mode<synchronous>, transform_indices = @transform_5, window_bounds = array<i64: 32, 32>}, {pipeline_mode = #tpu.pipeline_mode<synchronous>, transform_indices = @transform_6, window_bounds = array<i64: 32, 1>}, {pipeline_mode = #tpu.pipeline_mode<synchronous>, transform_indices = @transform_7, window_bounds = array<i64: 48, 32>}, {pipeline_mode = #tpu.pipeline_mode<synchronous>, transform_indices = @transform_8, window_bounds = array<i64: 48, 1>}, {transform_indices = @transform_9, window_bounds = array<i64: 8, 128>}]} {
    %c0 = arith.constant 0 : index
    %c0_0 = arith.constant 0 : index
    %0 = vector.load %arg1[%c0, %c0_0] : memref<16x128xbf16, #tpu.memory_space<vmem>>, vector<16x128xbf16>
    %c0_1 = arith.constant 0 : index
    %c0_2 = arith.constant 0 : index
    %1 = vector.load %arg2[%c0_1, %c0_2] : memref<32x16xbf16, #tpu.memory_space<vmem>>, vector<32x16xbf16>
    %cst = arith.constant dense<0.000000e+00> : vector<32x128xf32>
    %2 = tpu.matmul %1, %0, %cst {dimension_numbers = #tpu.dot_dimension_numbers<[1], [0], [0], [1], [0, 0, 1, 1], [], []>} : vector<32x16xbf16>, vector<16x128xbf16>, vector<32x128xf32> -> vector<32x128xf32>
    %c0_3 = arith.constant 0 : index
    %c0_4 = arith.constant 0 : index
    %3 = vector.load %arg3[%c0_3, %c0_4] : memref<32x1xf32, #tpu.memory_space<vmem>>, vector<32x1xf32>
    %4 = vector.broadcast %3 : vector<32x1xf32> to vector<32x128xf32>
    %5 = arith.addf %2, %4 : vector<32x128xf32>
    %cst_5 = arith.constant 0.000000e+00 : f32
    %6 = vector.broadcast %cst_5 : f32 to vector<32x128xf32>
    %7 = arith.maximumf %5, %6 : vector<32x128xf32>
    %8 = arith.truncf %7 : vector<32x128xf32> to vector<32x128xbf16>
    %c0_6 = arith.constant 0 : index
    %c0_7 = arith.constant 0 : index
    %9 = vector.load %arg4[%c0_6, %c0_7] : memref<32x32xbf16, #tpu.memory_space<vmem>>, vector<32x32xbf16>
    %cst_8 = arith.constant dense<0.000000e+00> : vector<32x128xf32>
    %10 = tpu.matmul %9, %8, %cst_8 {dimension_numbers = #tpu.dot_dimension_numbers<[1], [0], [0], [1], [0, 0, 1, 1], [], []>} : vector<32x32xbf16>, vector<32x128xbf16>, vector<32x128xf32> -> vector<32x128xf32>
    %c0_9 = arith.constant 0 : index
    %c0_10 = arith.constant 0 : index
    %11 = vector.load %arg5[%c0_9, %c0_10] : memref<32x1xf32, #tpu.memory_space<vmem>>, vector<32x1xf32>
    %12 = vector.broadcast %11 : vector<32x1xf32> to vector<32x128xf32>
    %13 = arith.addf %10, %12 : vector<32x128xf32>
    %cst_11 = arith.constant 0.000000e+00 : f32
    %14 = vector.broadcast %cst_11 : f32 to vector<32x128xf32>
    %15 = arith.maximumf %13, %14 : vector<32x128xf32>
    %16 = arith.truncf %15 : vector<32x128xf32> to vector<32x128xbf16>
    %c0_12 = arith.constant 0 : index
    %c0_13 = arith.constant 0 : index
    %17 = vector.load %arg6[%c0_12, %c0_13] : memref<32x32xbf16, #tpu.memory_space<vmem>>, vector<32x32xbf16>
    %cst_14 = arith.constant dense<0.000000e+00> : vector<32x128xf32>
    %18 = tpu.matmul %17, %16, %cst_14 {dimension_numbers = #tpu.dot_dimension_numbers<[1], [0], [0], [1], [0, 0, 1, 1], [], []>} : vector<32x32xbf16>, vector<32x128xbf16>, vector<32x128xf32> -> vector<32x128xf32>
    %c0_15 = arith.constant 0 : index
    %c0_16 = arith.constant 0 : index
    %19 = vector.load %arg7[%c0_15, %c0_16] : memref<32x1xf32, #tpu.memory_space<vmem>>, vector<32x1xf32>
    %20 = vector.broadcast %19 : vector<32x1xf32> to vector<32x128xf32>
    %21 = arith.addf %18, %20 : vector<32x128xf32>
    %22 = arith.truncf %21 : vector<32x128xf32> to vector<32x128xbf16>
    %c0_17 = arith.constant 0 : index
    %c0_18 = arith.constant 0 : index
    %23 = vector.load %arg8[%c0_17, %c0_18] : memref<48x32xbf16, #tpu.memory_space<vmem>>, vector<48x32xbf16>
    %cst_19 = arith.constant dense<0.000000e+00> : vector<48x128xf32>
    %24 = tpu.matmul %23, %22, %cst_19 {dimension_numbers = #tpu.dot_dimension_numbers<[1], [0], [0], [1], [0, 0, 1, 1], [], []>} : vector<48x32xbf16>, vector<32x128xbf16>, vector<48x128xf32> -> vector<48x128xf32>
    %c0_20 = arith.constant 0 : index
    %c0_21 = arith.constant 0 : index
    %25 = vector.load %arg9[%c0_20, %c0_21] : memref<48x1xf32, #tpu.memory_space<vmem>>, vector<48x1xf32>
    %26 = vector.broadcast %25 : vector<48x1xf32> to vector<48x128xf32>
    %27 = arith.addf %24, %26 : vector<48x128xf32>
    %28 = vector.extract_strided_slice %27 {offsets = [0, 0], sizes = [40, 128], strides = [1, 1]} : vector<48x128xf32> to vector<40x128xf32>
    %29 = math.tanh %28 : vector<40x128xf32>
    %30 = vector.extract_strided_slice %27 {offsets = [40, 0], sizes = [5, 128], strides = [1, 1]} : vector<48x128xf32> to vector<5x128xf32>
    %cst_22 = arith.constant dense<0xFF800000> : vector<128xf32>
    %31 = vector.multi_reduction <maximumf>, %30, %cst_22 [0] : vector<5x128xf32> to vector<128xf32>
    %32 = vector.shape_cast %31 : vector<128xf32> to vector<1x128xf32>
    %33 = vector.broadcast %32 : vector<1x128xf32> to vector<5x128xf32>
    %34 = arith.subf %30, %33 : vector<5x128xf32>
    %35 = math.exp %34 : vector<5x128xf32>
    %cst_23 = arith.constant dense<0.000000e+00> : vector<128xf32>
    %36 = vector.multi_reduction <add>, %35, %cst_23 [0] : vector<5x128xf32> to vector<128xf32>
    %37 = vector.shape_cast %36 : vector<128xf32> to vector<1x128xf32>
    %38 = tpu.reciprocal %37 {approx = true} : vector<1x128xf32> -> vector<1x128xf32>
    %39 = vector.broadcast %38 : vector<1x128xf32> to vector<5x128xf32>
    %40 = arith.mulf %35, %39 : vector<5x128xf32>
    %cst_24 = arith.constant 0.000000e+00 : f32
    %41 = vector.broadcast %cst_24 : f32 to vector<8x128xf32>
    %42 = vector.extract_strided_slice %40 {offsets = [0, 0], sizes = [1, 128], strides = [1, 1]} : vector<5x128xf32> to vector<1x128xf32>
    %43 = vector.extract_strided_slice %29 {offsets = [0, 0], sizes = [8, 128], strides = [1, 1]} : vector<40x128xf32> to vector<8x128xf32>
    %44 = vector.broadcast %42 : vector<1x128xf32> to vector<8x128xf32>
    %45 = arith.mulf %44, %43 : vector<8x128xf32>
    %46 = arith.addf %41, %45 : vector<8x128xf32>
    %47 = vector.extract_strided_slice %40 {offsets = [1, 0], sizes = [1, 128], strides = [1, 1]} : vector<5x128xf32> to vector<1x128xf32>
    %48 = vector.extract_strided_slice %29 {offsets = [8, 0], sizes = [8, 128], strides = [1, 1]} : vector<40x128xf32> to vector<8x128xf32>
    %49 = vector.broadcast %47 : vector<1x128xf32> to vector<8x128xf32>
    %50 = arith.mulf %49, %48 : vector<8x128xf32>
    %51 = arith.addf %46, %50 : vector<8x128xf32>
    %52 = vector.extract_strided_slice %40 {offsets = [2, 0], sizes = [1, 128], strides = [1, 1]} : vector<5x128xf32> to vector<1x128xf32>
    %53 = vector.extract_strided_slice %29 {offsets = [16, 0], sizes = [8, 128], strides = [1, 1]} : vector<40x128xf32> to vector<8x128xf32>
    %54 = vector.broadcast %52 : vector<1x128xf32> to vector<8x128xf32>
    %55 = arith.mulf %54, %53 : vector<8x128xf32>
    %56 = arith.addf %51, %55 : vector<8x128xf32>
    %57 = vector.extract_strided_slice %40 {offsets = [3, 0], sizes = [1, 128], strides = [1, 1]} : vector<5x128xf32> to vector<1x128xf32>
    %58 = vector.extract_strided_slice %29 {offsets = [24, 0], sizes = [8, 128], strides = [1, 1]} : vector<40x128xf32> to vector<8x128xf32>
    %59 = vector.broadcast %57 : vector<1x128xf32> to vector<8x128xf32>
    %60 = arith.mulf %59, %58 : vector<8x128xf32>
    %61 = arith.addf %56, %60 : vector<8x128xf32>
    %62 = vector.extract_strided_slice %40 {offsets = [4, 0], sizes = [1, 128], strides = [1, 1]} : vector<5x128xf32> to vector<1x128xf32>
    %63 = vector.extract_strided_slice %29 {offsets = [32, 0], sizes = [8, 128], strides = [1, 1]} : vector<40x128xf32> to vector<8x128xf32>
    %64 = vector.broadcast %62 : vector<1x128xf32> to vector<8x128xf32>
    %65 = arith.mulf %64, %63 : vector<8x128xf32>
    %66 = arith.addf %61, %65 : vector<8x128xf32>
    %c0_25 = arith.constant 0 : index
    %c0_26 = arith.constant 0 : index
    %67 = vector.load %arg10[%c0_25, %c0_26] : memref<8x128xf32, #tpu.memory_space<vmem>>, vector<8x128xf32>
    tpu.vector_store %arg10[%c0_25, %c0_26], %66 {strides = array<i32>} : memref<8x128xf32, #tpu.memory_space<vmem>>, vector<8x128xf32>,
    return
  }
  func.func @transform_0(%arg0: i32) -> (i32, i32) {
    %c0_i32 = arith.constant 0 : i32
    %c0_i32_0 = arith.constant 0 : i32
    return %c0_i32, %arg0 : i32, i32
  }
  func.func @transform_1(%arg0: i32) -> (i32, i32) {
    %c0_i32 = arith.constant 0 : i32
    %c0_i32_0 = arith.constant 0 : i32
    %c0_i32_1 = arith.constant 0 : i32
    return %c0_i32, %c0_i32_0 : i32, i32
  }
  func.func @transform_2(%arg0: i32) -> (i32, i32) {
    %c0_i32 = arith.constant 0 : i32
    %c0_i32_0 = arith.constant 0 : i32
    %c0_i32_1 = arith.constant 0 : i32
    return %c0_i32, %c0_i32_0 : i32, i32
  }
  func.func @transform_3(%arg0: i32) -> (i32, i32) {
    %c0_i32 = arith.constant 0 : i32
    %c0_i32_0 = arith.constant 0 : i32
    %c0_i32_1 = arith.constant 0 : i32
    return %c0_i32, %c0_i32_0 : i32, i32
  }
  func.func @transform_4(%arg0: i32) -> (i32, i32) {
    %c0_i32 = arith.constant 0 : i32
    %c0_i32_0 = arith.constant 0 : i32
    %c0_i32_1 = arith.constant 0 : i32
    return %c0_i32, %c0_i32_0 : i32, i32
  }
  func.func @transform_5(%arg0: i32) -> (i32, i32) {
    %c0_i32 = arith.constant 0 : i32
    %c0_i32_0 = arith.constant 0 : i32
    %c0_i32_1 = arith.constant 0 : i32
    return %c0_i32, %c0_i32_0 : i32, i32
  }
  func.func @transform_6(%arg0: i32) -> (i32, i32) {
    %c0_i32 = arith.constant 0 : i32
    %c0_i32_0 = arith.constant 0 : i32
    %c0_i32_1 = arith.constant 0 : i32
    return %c0_i32, %c0_i32_0 : i32, i32
  }
  func.func @transform_7(%arg0: i32) -> (i32, i32) {
    %c0_i32 = arith.constant 0 : i32
    %c0_i32_0 = arith.constant 0 : i32
    %c0_i32_1 = arith.constant 0 : i32
    return %c0_i32, %c0_i32_0 : i32, i32
  }
  func.func @transform_8(%arg0: i32) -> (i32, i32) {
    %c0_i32 = arith.constant 0 : i32
    %c0_i32_0 = arith.constant 0 : i32
    %c0_i32_1 = arith.constant 0 : i32
    return %c0_i32, %c0_i32_0 : i32, i32
  }
  func.func @transform_9(%arg0: i32) -> (i32, i32) {
    %c0_i32 = arith.constant 0 : i32
    %c0_i32_0 = arith.constant 0 : i32
    return %c0_i32, %arg0 : i32, i32
  }
}

</mosaic_0001>

<llo_original>
// kernel: tpu_custom_call.1
$region0: #{tpu_custom_call.1}
  #allocation0 [shape = 'u32[]', space=smem, size = 0x4, offset = 0x4, fixed_abs, tag = 'smem constant byte address 0x4 - core index']
  #allocation1 [shape = 'u32[144,128]{1,0:T(1,128)}', space=vmem, size = 0x12000, scoped, tag = 'internal scratch']
  %s0 = inlined_call_operand.vmem [shape: bf16[16,512], index: 0, kind: input, shape index: {}]
  %s1 = inlined_call_operand.vmem [shape: bf16[32,16], index: 1, kind: input, shape index: {}]
  %s2 = inlined_call_operand.vmem [shape: f32[32,1], index: 2, kind: input, shape index: {}]
  %s3 = inlined_call_operand.vmem [shape: bf16[32,32], index: 3, kind: input, shape index: {}]
  %s4 = inlined_call_operand.vmem [shape: f32[32,1], index: 4, kind: input, shape index: {}]
  %s5 = inlined_call_operand.vmem [shape: bf16[32,32], index: 5, kind: input, shape index: {}]
  %s6 = inlined_call_operand.vmem [shape: f32[32,1], index: 6, kind: input, shape index: {}]
  %s7 = inlined_call_operand.vmem [shape: bf16[48,32], index: 7, kind: input, shape index: {}]
  %s8 = inlined_call_operand.vmem [shape: f32[48,1], index: 8, kind: input, shape index: {}]
  %s9 = inlined_call_operand.hbm [shape: f32[8,512], index: 9, kind: output, shape index: {}]
  %s10 = sld [smem:[#allocation0]]
  $region110: #{tpu_custom_call.1} parent=0
    _
  %s12 = ssub.s32 1, %s10
  %s13 = scalar_select 0, %s12, %s10
  $region1: #{tpu_custom_call.1} parent=0
    #allocation2 [shape = 'u8[8192]{0}', space=vmem, size = 0x2000, scoped, tag = 'input window, operand 0']
    #allocation3 [shape = 'u8[8192]{0}', space=vmem, size = 0x2000, scoped, tag = 'output window, operand 0']
    #allocation4 [shape = 's32[2]{0}', space=sflag, size = 0x8, scoped, tag = 'scoped memory for tpu_custom_call.1']
    %14 = vsyncpa [#allocation4], 0
    %s15 = scalar_lea.sflag [#allocation4], 1
    %16 = vsyncpa %s15, 0
    loop: start=0, step=1, limit=6
    $region2: #{tpu_custom_call.1} parent=1 // loop_pre_header
      _
    $region3: #{tpu_custom_call.1} parent=1 // loop_header
      %s18 = sphi 0, %s22
      %p19 = scmp.ge.s32.totalorder %s18, 6
      %s28 = sphi 0, %s30
      %s31 = sphi 0, %s28
      %s32 = sphi 0, %s31
      %s48 = sphi 0, %s32
      %s52 = sphi 0, %s52
      %s54 = sphi 0, %s52
      %s55 = sphi 0, %s54
      %s69 = sphi 0, %s55
      %s73 = sphi 0, %s73
      %s75 = sphi 0, %s73
      %s76 = sphi 0, %s75
      %s90 = sphi 0, %s76
      %s94 = sphi 0, %s94
      %s96 = sphi 0, %s94
      %s97 = sphi 0, %s96
      %s111 = sphi 0, %s97
      %s115 = sphi 0, %s115
      %s117 = sphi 0, %s115
      %s118 = sphi 0, %s117
      %s132 = sphi 0, %s118
      %s136 = sphi 0, %s136
      %s138 = sphi 0, %s136
      %s139 = sphi 0, %s138
      %s153 = sphi 0, %s139
      %s157 = sphi 0, %s157
      %s159 = sphi 0, %s157
      %s160 = sphi 0, %s159
      %s174 = sphi 0, %s160
      %s178 = sphi 0, %s178
      %s180 = sphi 0, %s178
      %s181 = sphi 0, %s180
      %s195 = sphi 0, %s181
      %s199 = sphi 0, %s199
      %s201 = sphi 0, %s199
      %s202 = sphi 0, %s201
      %s216 = sphi 0, %s202
      %s222 = sphi 0, %s224
      %s225 = sphi 0, %s222
      %s226 = sphi 0, %s225
      %s242 = sphi 0, %s226
    $region4: #{tpu_custom_call.1} parent=1 // loop_header_branch
      %21 = sbr.rel (%p19) target = $region8
    $region5: #{tpu_custom_call.1} parent=1 // loop_body
      %s23 = ssub.s32 %s18, 1
      %s24 = ssub.s32 %s18, 2
      %s25 = sadd.s32 %s18, 1
      %s26 = ssub.s32 %s18, %s25
      %p27 = scmp.eq.s32.totalorder %s26, 0
      %s29 = sadd.s32 %s28, 1
      %s30 = scalar_select %p27, %s28, %s29
      %p33 = pneg %p27
      %p34 = scmp.eq.s32.totalorder %s18, 3
      %p35 = por %p33, %p34
      %p36 = scmp.ne.s32.totalorder %s28, %s31
      %p37 = scmp.eq.s32.totalorder %s18, 0
      %p38 = por %p36, %p37
      %p39 = scmp.ne.s32.totalorder %s28, %s31
      %p40 = scmp.eq.s32.totalorder %s23, 3
      %p41 = por %p39, %p40
      %p42 = scmp.ne.s32.totalorder %s31, %s32
      %p43 = scmp.eq.s32.totalorder %s23, 0
      %p44 = por %p42, %p43
      %p45 = scmp.ne.s32.totalorder %s31, %s32
      %p46 = scmp.eq.s32.totalorder %s24, 3
      %p47 = por %p45, %p46
      %p49 = scmp.ne.s32.totalorder %s32, %s48
      %p50 = scmp.eq.s32.totalorder %s24, 0
      %p51 = por %p49, %p50
      %s53 = sadd.s32 %s52, 1
      %p56 = scmp.eq.s32.totalorder %s18, 3
      %p57 = scmp.ne.s32.totalorder %s52, %s54
      %p58 = scmp.eq.s32.totalorder %s18, 0
      %p59 = por %p57, %p58
      %p60 = scmp.ne.s32.totalorder %s52, %s54
      %p61 = scmp.eq.s32.totalorder %s23, 3
      %p62 = por %p60, %p61
      %p63 = scmp.ne.s32.totalorder %s54, %s55
      %p64 = scmp.eq.s32.totalorder %s23, 0
      %p65 = por %p63, %p64
      %p66 = scmp.ne.s32.totalorder %s54, %s55
      %p67 = scmp.eq.s32.totalorder %s24, 3
      %p68 = por %p66, %p67
      %p70 = scmp.ne.s32.totalorder %s55, %s69
      %p71 = scmp.eq.s32.totalorder %s24, 0
      %p72 = por %p70, %p71
      %s74 = sadd.s32 %s73, 1
      %p77 = scmp.eq.s32.totalorder %s18, 3
      %p78 = scmp.ne.s32.totalorder %s73, %s75
      %p79 = scmp.eq.s32.totalorder %s18, 0
      %p80 = por %p78, %p79
      %p81 = scmp.ne.s32.totalorder %s73, %s75
      %p82 = scmp.eq.s32.totalorder %s23, 3
      %p83 = por %p81, %p82
      %p84 = scmp.ne.s32.totalorder %s75, %s76
      %p85 = scmp.eq.s32.totalorder %s23, 0
      %p86 = por %p84, %p85
      %p87 = scmp.ne.s32.totalorder %s75, %s76
      %p88 = scmp.eq.s32.totalorder %s24, 3
      %p89 = por %p87, %p88
      %p91 = scmp.ne.s32.totalorder %s76, %s90
      %p92 = scmp.eq.s32.totalorder %s24, 0
      %p93 = por %p91, %p92
      %s95 = sadd.s32 %s94, 1
      %p98 = scmp.eq.s32.totalorder %s18, 3
      %p99 = scmp.ne.s32.totalorder %s94, %s96
      %p100 = scmp.eq.s32.totalorder %s18, 0
      %p101 = por %p99, %p100
      %p102 = scmp.ne.s32.totalorder %s94, %s96
      %p103 = scmp.eq.s32.totalorder %s23, 3
      %p104 = por %p102, %p103
      %p105 = scmp.ne.s32.totalorder %s96, %s97
      %p106 = scmp.eq.s32.totalorder %s23, 0
      %p107 = por %p105, %p106
      %p108 = scmp.ne.s32.totalorder %s96, %s97
      %p109 = scmp.eq.s32.totalorder %s24, 3
      %p110 = por %p108, %p109
      %p112 = scmp.ne.s32.totalorder %s97, %s111
      %p113 = scmp.eq.s32.totalorder %s24, 0
      %p114 = por %p112, %p113
      %s116 = sadd.s32 %s115, 1
      %p119 = scmp.eq.s32.totalorder %s18, 3
      %p120 = scmp.ne.s32.totalorder %s115, %s117
      %p121 = scmp.eq.s32.totalorder %s18, 0
      %p122 = por %p120, %p121
      %p123 = scmp.ne.s32.totalorder %s115, %s117
      %p124 = scmp.eq.s32.totalorder %s23, 3
      %p125 = por %p123, %p124
      %p126 = scmp.ne.s32.totalorder %s117, %s118
      %p127 = scmp.eq.s32.totalorder %s23, 0
      %p128 = por %p126, %p127
      %p129 = scmp.ne.s32.totalorder %s117, %s118
      %p130 = scmp.eq.s32.totalorder %s24, 3
      %p131 = por %p129, %p130
      %p133 = scmp.ne.s32.totalorder %s118, %s132
      %p134 = scmp.eq.s32.totalorder %s24, 0
      %p135 = por %p133, %p134
      %s137 = sadd.s32 %s136, 1
      %p140 = scmp.eq.s32.totalorder %s18, 3
      %p141 = scmp.ne.s32.totalorder %s136, %s138
      %p142 = scmp.eq.s32.totalorder %s18, 0
      %p143 = por %p141, %p142
      %p144 = scmp.ne.s32.totalorder %s136, %s138
      %p145 = scmp.eq.s32.totalorder %s23, 3
      %p146 = por %p144, %p145
      %p147 = scmp.ne.s32.totalorder %s138, %s139
      %p148 = scmp.eq.s32.totalorder %s23, 0
      %p149 = por %p147, %p148
      %p150 = scmp.ne.s32.totalorder %s138, %s139
      %p151 = scmp.eq.s32.totalorder %s24, 3
      %p152 = por %p150, %p151
      %p154 = scmp.ne.s32.totalorder %s139, %s153
      %p155 = scmp.eq.s32.totalorder %s24, 0
      %p156 = por %p154, %p155
      %s158 = sadd.s32 %s157, 1
      %p161 = scmp.eq.s32.totalorder %s18, 3
      %p162 = scmp.ne.s32.totalorder %s157, %s159
      %p163 = scmp.eq.s32.totalorder %s18, 0
      %p164 = por %p162, %p163
      %p165 = scmp.ne.s32.totalorder %s157, %s159
      %p166 = scmp.eq.s32.totalorder %s23, 3
      %p167 = por %p165, %p166
      %p168 = scmp.ne.s32.totalorder %s159, %s160
      %p169 = scmp.eq.s32.totalorder %s23, 0
      %p170 = por %p168, %p169
      %p171 = scmp.ne.s32.totalorder %s159, %s160
      %p172 = scmp.eq.s32.totalorder %s24, 3
      %p173 = por %p171, %p172
      %p175 = scmp.ne.s32.totalorder %s160, %s174
      %p176 = scmp.eq.s32.totalorder %s24, 0
      %p177 = por %p175, %p176
      %s179 = sadd.s32 %s178, 1
      %p182 = scmp.eq.s32.totalorder %s18, 3
      %p183 = scmp.ne.s32.totalorder %s178, %s180
      %p184 = scmp.eq.s32.totalorder %s18, 0
      %p185 = por %p183, %p184
      %p186 = scmp.ne.s32.totalorder %s178, %s180
      %p187 = scmp.eq.s32.totalorder %s23, 3
      %p188 = por %p186, %p187
      %p189 = scmp.ne.s32.totalorder %s180, %s181
      %p190 = scmp.eq.s32.totalorder %s23, 0
      %p191 = por %p189, %p190
      %p192 = scmp.ne.s32.totalorder %s180, %s181
      %p193 = scmp.eq.s32.totalorder %s24, 3
      %p194 = por %p192, %p193
      %p196 = scmp.ne.s32.totalorder %s181, %s195
      %p197 = scmp.eq.s32.totalorder %s24, 0
      %p198 = por %p196, %p197
      %s200 = sadd.s32 %s199, 1
      %p203 = scmp.eq.s32.totalorder %s18, 3
      %p204 = scmp.ne.s32.totalorder %s199, %s201
      %p205 = scmp.eq.s32.totalorder %s18, 0
      %p206 = por %p204, %p205
      %p207 = scmp.ne.s32.totalorder %s199, %s201
      %p208 = scmp.eq.s32.totalorder %s23, 3
      %p209 = por %p207, %p208
      %p210 = scmp.ne.s32.totalorder %s201, %s202
      %p211 = scmp.eq.s32.totalorder %s23, 0
      %p212 = por %p210, %p211
      %p213 = scmp.ne.s32.totalorder %s201, %s202
      %p214 = scmp.eq.s32.totalorder %s24, 3
      %p215 = por %p213, %p214
      %p217 = scmp.ne.s32.totalorder %s202, %s216
      %p218 = scmp.eq.s32.totalorder %s24, 0
      %p219 = por %p217, %p218
      %s220 = ssub.s32 %s18, %s25
      %p221 = scmp.eq.s32.totalorder %s220, 0
      %s223 = sadd.s32 %s222, 1
      %s224 = scalar_select %p221, %s222, %s223
      %p227 = pneg %p221
      %p228 = scmp.eq.s32.totalorder %s18, 3
      %p229 = por %p227, %p228
      %p230 = scmp.ne.s32.totalorder %s222, %s225
      %p231 = scmp.eq.s32.totalorder %s18, 0
      %p232 = por %p230, %p231
      %p233 = scmp.ne.s32.totalorder %s222, %s225
      %p234 = scmp.eq.s32.totalorder %s23, 3
      %p235 = por %p233, %p234
      %p236 = scmp.ne.s32.totalorder %s225, %s226
      %p237 = scmp.eq.s32.totalorder %s23, 0
      %p238 = por %p236, %p237
      %p239 = scmp.ne.s32.totalorder %s225, %s226
      %p240 = scmp.eq.s32.totalorder %s24, 3
      %p241 = por %p239, %p240
      %p243 = scmp.ne.s32.totalorder %s226, %s242
      %p244 = scmp.eq.s32.totalorder %s24, 0
      %p245 = por %p243, %p244
      %p246 = scmp.le.s32.totalorder 1, %s18
      %p247 = scmp.lt.s32.totalorder %s18, 5
      %p248 = pnand %p246, %p247
      %p249 = pneg %p248
      // Predicated region
      $region9: #{tpu_custom_call.1} parent=5 // pred_check
        _
      $region10: #{tpu_custom_call.1} parent=5 // pred_check_branch
        %251 = sbr.rel (%p248) target = $region12
      $region11: #{tpu_custom_call.1} parent=5 // pred_region
        %s252 = ssub.s32 %s18, 1
        // Predicated region
        $region13: #{tpu_custom_call.1} parent=11 // pred_check
          %p253 = pneg %p65
        $region14: #{tpu_custom_call.1} parent=11 // pred_check_branch
          %255 = sbr.rel (%p253) target = $region16
        $region15: #{tpu_custom_call.1} parent=11 // pred_region
          _
        $region16: #{tpu_custom_call.1} parent=11 // pred_fallthru
          _
        // Predicated region
        $region17: #{tpu_custom_call.1} parent=11 // pred_check
          %p256 = pneg %p86
        $region18: #{tpu_custom_call.1} parent=11 // pred_check_branch
          %258 = sbr.rel (%p256) target = $region20
        $region19: #{tpu_custom_call.1} parent=11 // pred_region
          _
        $region20: #{tpu_custom_call.1} parent=11 // pred_fallthru
          _
        // Predicated region
        $region21: #{tpu_custom_call.1} parent=11 // pred_check
          %p259 = pneg %p107
        $region22: #{tpu_custom_call.1} parent=11 // pred_check_branch
          %261 = sbr.rel (%p259) target = $region24
        $region23: #{tpu_custom_call.1} parent=11 // pred_region
          _
        $region24: #{tpu_custom_call.1} parent=11 // pred_fallthru
          _
        // Predicated region
        $region25: #{tpu_custom_call.1} parent=11 // pred_check
          %p262 = pneg %p128
        $region26: #{tpu_custom_call.1} parent=11 // pred_check_branch
          %264 = sbr.rel (%p262) target = $region28
        $region27: #{tpu_custom_call.1} parent=11 // pred_region
          _
        $region28: #{tpu_custom_call.1} parent=11 // pred_fallthru
          _
        // Predicated region
        $region29: #{tpu_custom_call.1} parent=11 // pred_check
          %p265 = pneg %p149
        $region30: #{tpu_custom_call.1} parent=11 // pred_check_branch
          %267 = sbr.rel (%p265) target = $region32
        $region31: #{tpu_custom_call.1} parent=11 // pred_region
          _
        $region32: #{tpu_custom_call.1} parent=11 // pred_fallthru
          _
        // Predicated region
        $region33: #{tpu_custom_call.1} parent=11 // pred_check
          %p268 = pneg %p170
        $region34: #{tpu_custom_call.1} parent=11 // pred_check_branch
          %270 = sbr.rel (%p268) target = $region36
        $region35: #{tpu_custom_call.1} parent=11 // pred_region
          _
        $region36: #{tpu_custom_call.1} parent=11 // pred_fallthru
          _
        // Predicated region
        $region37: #{tpu_custom_call.1} parent=11 // pred_check
          %p271 = pneg %p191
        $region38: #{tpu_custom_call.1} parent=11 // pred_check_branch
          %273 = sbr.rel (%p271) target = $region40
        $region39: #{tpu_custom_call.1} parent=11 // pred_region
          _
        $region40: #{tpu_custom_call.1} parent=11 // pred_fallthru
          _
        // Predicated region
        $region41: #{tpu_custom_call.1} parent=11 // pred_check
          %p274 = pneg %p212
        $region42: #{tpu_custom_call.1} parent=11 // pred_check_branch
          %276 = sbr.rel (%p274) target = $region44
        $region43: #{tpu_custom_call.1} parent=11 // pred_region
          _
        $region44: #{tpu_custom_call.1} parent=11 // pred_fallthru
          _
      $region12: #{tpu_custom_call.1} parent=5 // pred_fallthru
        _
      %p277 = scmp.lt.s32.totalorder %s18, 4
      // Predicated region
      $region45: #{tpu_custom_call.1} parent=5 // pred_check
        %p278 = pneg %p277
      $region46: #{tpu_custom_call.1} parent=5 // pred_check_branch
        %280 = sbr.rel (%p278) target = $region48
      $region47: #{tpu_custom_call.1} parent=5 // pred_region
        // Predicated region
        $region49: #{tpu_custom_call.1} parent=47 // pred_check
          %p281 = pneg %p38
        $region50: #{tpu_custom_call.1} parent=47 // pred_check_branch
          %283 = sbr.rel (%p281) target = $region52
        $region51: #{tpu_custom_call.1} parent=47 // pred_region
          %s284 = sand.u32 %s28, 1
          %s285 = sand.u32 %s28, 1
          %s286 = smul.addr %s285, 8
          %s287 = scalar_lea.vmem [#allocation2], %s286
          %s288 = smul.addr %s18, 4
          %s289 = scalar_lea.vmem %s0, %s288
          // Predicated region
          $region53: #{tpu_custom_call.1} parent=51 // pred_check
            _
          $region54: #{tpu_custom_call.1} parent=51 // pred_check_branch
            %291 = sbr.rel (0) target = $region56
          $region55: #{tpu_custom_call.1} parent=51 // pred_region
            // Predicated region
            $region57: #{tpu_custom_call.1} parent=55 // pred_check
              _
            $region58: #{tpu_custom_call.1} parent=55 // pred_check_branch
              %293 = sbr.rel target = $region60
            $region59: #{tpu_custom_call.1} parent=55 // pred_region
              // Predicated region
              $region72: #{tpu_custom_call.1} parent=59 // pred_check
                _
              $region73: #{tpu_custom_call.1} parent=59 // pred_check_branch
                %310 = sbr.rel (0) target = $region75
              $region74: #{tpu_custom_call.1} parent=59 // pred_region
                loop: start=0, step=1, limit=1
                $region76: #{tpu_custom_call.1} parent=74 // loop_pre_header
                  _
                $region77: #{tpu_custom_call.1} parent=74 // loop_header
                  %s312 = sphi 0, %s316
                  %p313 = scmp.ge.s32.totalorder %s312, 1
                  %s317 = sphi %s289, %s289
                  %s318 = sphi %s287, %s287
                $region78: #{tpu_custom_call.1} parent=74 // loop_header_branch
                  %315 = sbr.rel (%p313) target = $region82
                $region79: #{tpu_custom_call.1} parent=74 // loop_body
                  _
                $region80: #{tpu_custom_call.1} parent=74 // loop_footer
                  %s316 = sadd.s32 1, %s312
                $region81: #{tpu_custom_call.1} parent=74 // loop_footer_branch
                  %311 = sbr.rel target = $region77
                $region82: #{tpu_custom_call.1} parent=74 // loop_exit
                  _
                loop: start=0, step=1, limit=1
                $region83: #{tpu_custom_call.1} parent=74 // loop_pre_header
                  _
                $region84: #{tpu_custom_call.1} parent=74 // loop_header
                  %s321 = sphi 0, %s325
                  %p322 = scmp.ge.s32.totalorder %s321, 1
                  %s326 = sphi %s289, %s289
                  %s327 = sphi %s287, %s287
                $region85: #{tpu_custom_call.1} parent=74 // loop_header_branch
                  %324 = sbr.rel (%p322) target = $region89
                $region86: #{tpu_custom_call.1} parent=74 // loop_body
                  %v328 = vld [vmem:[%s326] sm:$0xf]
                  %329 = vst [vmem:[%s327] sm:$0xf] %v328
                  %v330 = vld [vmem:[%s326 + $0x10] sm:$0xf]
                  %331 = vst [vmem:[%s327 + $0x4] sm:$0xf] %v330
                $region87: #{tpu_custom_call.1} parent=74 // loop_footer
                  %s325 = sadd.s32 1, %s321
                $region88: #{tpu_custom_call.1} parent=74 // loop_footer_branch
                  %320 = sbr.rel target = $region84
                $region89: #{tpu_custom_call.1} parent=74 // loop_exit
                  _
              $region75: #{tpu_custom_call.1} parent=59 // pred_fallthru
                _
            $region60: #{tpu_custom_call.1} parent=55 // pred_fallthru
              _
            // Predicated region
            $region61: #{tpu_custom_call.1} parent=55 // pred_check
              _
            $region62: #{tpu_custom_call.1} parent=55 // pred_check_branch
              %295 = sbr.rel (0) target = $region64
            $region63: #{tpu_custom_call.1} parent=55 // pred_region
              loop: start=0, step=1, limit=1
              $region65: #{tpu_custom_call.1} parent=63 // loop_pre_header
                _
              $region66: #{tpu_custom_call.1} parent=63 // loop_header
                %s298 = sphi 0, %s302
                %p299 = scmp.ge.s32.totalorder %s298, 1
                %s303 = sphi %s289, %s289
                %s304 = sphi %s287, %s287
              $region67: #{tpu_custom_call.1} parent=63 // loop_header_branch
                %301 = sbr.rel (%p299) target = $region71
              $region68: #{tpu_custom_call.1} parent=63 // loop_body
                %v305 = vld [vmem:[%s303] sm:$0xf]
                %306 = vst [vmem:[%s304] sm:$0xf] %v305
                %v307 = vld [vmem:[%s303 + $0x10] sm:$0xf]
                %308 = vst [vmem:[%s304 + $0x4] sm:$0xf] %v307
              $region69: #{tpu_custom_call.1} parent=63 // loop_footer
                %s302 = sadd.s32 1, %s298
              $region70: #{tpu_custom_call.1} parent=63 // loop_footer_branch
                %297 = sbr.rel target = $region66
              $region71: #{tpu_custom_call.1} parent=63 // loop_exit
                _
            $region64: #{tpu_custom_call.1} parent=55 // pred_fallthru
              _
          $region56: #{tpu_custom_call.1} parent=51 // pred_fallthru
            _
          %332 = vnop
        $region52: #{tpu_custom_call.1} parent=47 // pred_fallthru
          _
      $region48: #{tpu_custom_call.1} parent=5 // pred_fallthru
        _
      %p333 = scmp.le.s32.totalorder 1, %s18
      %p334 = scmp.lt.s32.totalorder %s18, 5
      %p335 = pnand %p333, %p334
      %p336 = pneg %p335
      // Predicated region
      $region90: #{tpu_custom_call.1} parent=5 // pred_check
        _
      $region91: #{tpu_custom_call.1} parent=5 // pred_check_branch
        %338 = sbr.rel (%p335) target = $region93
      $region92: #{tpu_custom_call.1} parent=5 // pred_region
        %s339 = ssub.s32 %s18, 1
        %s340 = sand.u32 %s31, 1
        %s341 = sand.u32 %s31, 1
        %s342 = smul.addr %s341, 8
        %s343 = scalar_lea.vmem [#allocation2], %s342
        // Predicated region
        $region94: #{tpu_custom_call.1} parent=92 // pred_check
          %p344 = pneg %p44
        $region95: #{tpu_custom_call.1} parent=92 // pred_check_branch
          %346 = sbr.rel (%p344) target = $region97
        $region96: #{tpu_custom_call.1} parent=92 // pred_region
          _
        $region97: #{tpu_custom_call.1} parent=92 // pred_fallthru
          _
        %s347 = sand.u32 %s31, 1
        %s348 = sand.u32 %s31, 1
        %s349 = smul.addr %s348, 8
        %s350 = scalar_lea.vmem [#allocation2], %s349
        %p351 = pneg %p44
        %p352 = pneg %p41
        %p353 = pneg %p65
        %p354 = pneg %p62
        %p355 = pneg %p86
        %p356 = pneg %p83
        %p357 = pneg %p107
        %p358 = pneg %p104
        %p359 = pneg %p128
        %p360 = pneg %p125
        %p361 = pneg %p149
        %p362 = pneg %p146
        %p363 = pneg %p170
        %p364 = pneg %p167
        %p365 = pneg %p191
        %p366 = pneg %p188
        %p367 = pneg %p212
        %p368 = pneg %p209
        %p369 = pneg %p238
        %p370 = pneg %p235
        %s371 = sand.u32 %s225, 1
        %s372 = scalar_lea.sflag [#allocation4], %s371
        %s373 = sand.u32 %s225, 1
        %s374 = smul.addr %s373, 8
        %s375 = scalar_lea.vmem [#allocation3], %s374
        %v377 = vld [vmem:[%s343] sm:$0xf]
        %v378 = vld [vmem:[%s343 + $0x4] sm:$0xf]
        %v379 = vld [vmem:[%s1] sm:$0xf]
        %v380 = vld [vmem:[%s1 + $0x4] sm:$0xf]
        %v381 = vld [vmem:[%s1 + $0x8] sm:$0xf]
        %v382 = vld [vmem:[%s1 + $0xc] sm:$0xf]
        %v383 = vld [vmem:[%s2] sm:$0xff]
        %v384 = vld [vmem:[%s2 + $0x8] sm:$0xff]
        %v385 = vld [vmem:[%s2 + $0x10] sm:$0xff]
        %v386 = vld [vmem:[%s2 + $0x18] sm:$0xff]
        %388 = vset.pattern.permute.xlu0 0
        %389 = vperm.xlu0 %388, %v383
        %v390 = vpop.permute.xlu0 %389
        %393 = vset.pattern.permute.xlu0 0
        %394 = vperm.xlu0 %393, %v384
        %v395 = vpop.permute.xlu0 %394
        %398 = vset.pattern.permute.xlu0 0
        %399 = vperm.xlu0 %398, %v385
        %v400 = vpop.permute.xlu0 %399
        %403 = vset.pattern.permute.xlu0 0
        %404 = vperm.xlu0 %403, %v386
        %v405 = vpop.permute.xlu0 %404
        %v411 = vunpack.c.l.b16 %v379
        %v412 = vunpack.c.l.b16 %v380
        %v413 = vunpack.c.l.b16 %v381
        %v414 = vunpack.c.l.b16 %v382
        %v415 = vpack.c.b16 %v412, %v411
        %v416 = vpack.c.b16 %v414, %v413
        %v419 = vunpack.c.l.b16 %v377
        %v420 = vunpack.c.l.b16 %v378
        %v421 = vpack.c.b16 %v420, %v419
        %vm423 = vcmask 130048
        %v425 = vsel %vm423, %v415, 0
        %v428 = vsel %vm423, %v416, 0
        %430 = vmatprep.subr.bf16.mxu0 0
        %431 = vmatpush1.bf16.msra.mxu0 %v421
        %432 = vmatprep.subr.bf16.mxu0 0
        %433 = vmatpush1.bf16.msra.mxu0 0
        %434 = vmatprep.subr.bf16.mxu0 0
        %435 = vmatpush1.bf16.msra.mxu0 0
        %436 = vmatprep.subr.bf16.mxu0 0
        %437 = vmatpush1.bf16.msra.mxu0 0
        %438 = vmatprep.subr.bf16.mxu0 0
        %439 = vmatpush1.bf16.msra.mxu0 0
        %440 = vmatprep.subr.bf16.mxu0 0
        %441 = vmatpush1.bf16.msra.mxu0 0
        %442 = vmatprep.subr.bf16.mxu0 0
        %443 = vmatpush1.bf16.msra.mxu0 0
        %444 = vmatprep.subr.bf16.mxu0 0
        %445 = vmatpush1.bf16.msra.mxu0 0
        %446 = vmatprep.subr.bf16.mxu0 0
        %447 = vmatpush1.bf16.msra.mxu0 0
        %448 = vmatprep.subr.bf16.mxu0 0
        %449 = vmatpush1.bf16.msra.mxu0 0
        %450 = vmatprep.subr.bf16.mxu0 0
        %451 = vmatpush1.bf16.msra.mxu0 0
        %452 = vmatprep.subr.bf16.mxu0 0
        %453 = vmatpush1.bf16.msra.mxu0 0
        %454 = vmatprep.subr.bf16.mxu0 0
        %455 = vmatpush1.bf16.msra.mxu0 0
        %456 = vmatprep.subr.bf16.mxu0 0
        %457 = vmatpush1.bf16.msra.mxu0 0
        %458 = vmatprep.subr.bf16.mxu0 0
        %459 = vmatpush1.bf16.msra.mxu0 0
        %460 = vmatprep.subr.bf16.mxu0 0
        %461 = vmatpush1.bf16.msra.mxu0 0
        %462 = vmatprep.mubr.bf16.mxu0 0
        %463 = vmatmul.mubr.bf16.gmra.mrb[0].mxu0 %v425
        %v464 = vpop.f32.mrb[0].mxu0
        %v465 = vadd.f32 %v390, %v464
        %v466 = vpop.f32.mrb[0].mxu0
        %v467 = vpop.f32.mrb[0].mxu0
        %v468 = vadd.f32 %v395, %v467
        %v469 = vpop.f32.mrb[0].mxu0
        %470 = vmatprep.mubr.bf16.mxu0 0
        %471 = vmatmul.mubr.bf16.gmra.mrb[0].mxu0 %v428
        %v472 = vpop.f32.mrb[0].mxu0
        %v473 = vadd.f32 %v400, %v472
        %v474 = vpop.f32.mrb[0].mxu0
        %v475 = vpop.f32.mrb[0].mxu0
        %v476 = vadd.f32 %v405, %v475
        %v477 = vpop.f32.mrb[0].mxu0
        %478 = vdwg.mxu0
        %v479 = vmax.f32 %v465, 0.0
        %v480 = vmax.f32 %v468, 0.0
        %v481 = vmax.f32 %v473, 0.0
        %v482 = vmax.f32 %v476, 0.0
        %v483 = vpack.c.bf16 %v480, %v479
        %v484 = vpack.c.bf16 %v482, %v481
        %v485 = vld [vmem:[%s3] sm:$0xf]
        %v486 = vld [vmem:[%s3 + $0x4] sm:$0xf]
        %v487 = vld [vmem:[%s3 + $0x8] sm:$0xf]
        %v488 = vld [vmem:[%s3 + $0xc] sm:$0xf]
        %v489 = vld [vmem:[%s4] sm:$0xff]
        %v490 = vld [vmem:[%s4 + $0x8] sm:$0xff]
        %v491 = vld [vmem:[%s4 + $0x10] sm:$0xff]
        %v492 = vld [vmem:[%s4 + $0x18] sm:$0xff]
        %494 = vset.pattern.permute.xlu0 0
        %495 = vperm.xlu0 %494, %v489
        %v496 = vpop.permute.xlu0 %495
        %499 = vset.pattern.permute.xlu0 0
        %500 = vperm.xlu0 %499, %v490
        %v501 = vpop.permute.xlu0 %500
        %504 = vset.pattern.permute.xlu0 0
        %505 = vperm.xlu0 %504, %v491
        %v506 = vpop.permute.xlu0 %505
        %509 = vset.pattern.permute.xlu0 0
        %510 = vperm.xlu0 %509, %v492
        %v511 = vpop.permute.xlu0 %510
        %v517 = vunpack.c.l.b16 %v485
        %v518 = vunpack.c.l.b16 %v486
        %v519 = vunpack.c.l.b16 %v487
        %v520 = vunpack.c.l.b16 %v488
        %v521 = vpack.c.b16 %v518, %v517
        %v522 = vpack.c.b16 %v520, %v519
        %vm523 = vcmask 261120
        %v525 = vsel %vm523, %v521, 0
        %v528 = vsel %vm523, %v522, 0
        %530 = vmatprep.subr.bf16.mxu0 0
        %531 = vmatpush1.bf16.msra.mxu0 %v483
        %532 = vmatprep.subr.bf16.mxu0 0
        %533 = vmatpush1.bf16.msra.mxu0 %v484
        %534 = vmatprep.subr.bf16.mxu0 0
        %535 = vmatpush1.bf16.msra.mxu0 0
        %536 = vmatprep.subr.bf16.mxu0 0
        %537 = vmatpush1.bf16.msra.mxu0 0
        %538 = vmatprep.subr.bf16.mxu0 0
        %539 = vmatpush1.bf16.msra.mxu0 0
        %540 = vmatprep.subr.bf16.mxu0 0
        %541 = vmatpush1.bf16.msra.mxu0 0
        %542 = vmatprep.subr.bf16.mxu0 0
        %543 = vmatpush1.bf16.msra.mxu0 0
        %544 = vmatprep.subr.bf16.mxu0 0
        %545 = vmatpush1.bf16.msra.mxu0 0
        %546 = vmatprep.subr.bf16.mxu0 0
        %547 = vmatpush1.bf16.msra.mxu0 0
        %548 = vmatprep.subr.bf16.mxu0 0
        %549 = vmatpush1.bf16.msra.mxu0 0
        %550 = vmatprep.subr.bf16.mxu0 0
        %551 = vmatpush1.bf16.msra.mxu0 0
        %552 = vmatprep.subr.bf16.mxu0 0
        %553 = vmatpush1.bf16.msra.mxu0 0
        %554 = vmatprep.subr.bf16.mxu0 0
        %555 = vmatpush1.bf16.msra.mxu0 0
        %556 = vmatprep.subr.bf16.mxu0 0
        %557 = vmatpush1.bf16.msra.mxu0 0
        %558 = vmatprep.subr.bf16.mxu0 0
        %559 = vmatpush1.bf16.msra.mxu0 0
        %560 = vmatprep.subr.bf16.mxu0 0
        %561 = vmatpush1.bf16.msra.mxu0 0
        %562 = vmatprep.mubr.bf16.mxu0 0
        %563 = vmatmul.mubr.bf16.gmra.mrb[0].mxu0 %v525
        %v564 = vpop.f32.mrb[0].mxu0
        %v565 = vadd.f32 %v496, %v564
        %v566 = vpop.f32.mrb[0].mxu0
        %v567 = vpop.f32.mrb[0].mxu0
        %v568 = vadd.f32 %v501, %v567
        %v569 = vpop.f32.mrb[0].mxu0
        %570 = vmatprep.mubr.bf16.mxu0 0
        %571 = vmatmul.mubr.bf16.gmra.mrb[0].mxu0 %v528
        %v572 = vpop.f32.mrb[0].mxu0
        %v573 = vadd.f32 %v506, %v572
        %v574 = vpop.f32.mrb[0].mxu0
        %v575 = vpop.f32.mrb[0].mxu0
        %v576 = vadd.f32 %v511, %v575
        %v577 = vpop.f32.mrb[0].mxu0
        %578 = vdwg.mxu0
        %v579 = vmax.f32 %v565, 0.0
        %v580 = vmax.f32 %v568, 0.0
        %v581 = vmax.f32 %v573, 0.0
        %v582 = vmax.f32 %v576, 0.0
        %v583 = vpack.c.bf16 %v580, %v579
        %v584 = vpack.c.bf16 %v582, %v581
        %v585 = vld [vmem:[%s5] sm:$0xf]
        %v586 = vld [vmem:[%s5 + $0x4] sm:$0xf]
        %v587 = vld [vmem:[%s5 + $0x8] sm:$0xf]
        %v588 = vld [vmem:[%s5 + $0xc] sm:$0xf]
        %v589 = vld [vmem:[%s6] sm:$0xff]
        %v590 = vld [vmem:[%s6 + $0x8] sm:$0xff]
        %v591 = vld [vmem:[%s6 + $0x10] sm:$0xff]
        %v592 = vld [vmem:[%s6 + $0x18] sm:$0xff]
        %594 = vset.pattern.permute.xlu0 0
        %595 = vperm.xlu0 %594, %v589
        %v596 = vpop.permute.xlu0 %595
        %599 = vset.pattern.permute.xlu0 0
        %600 = vperm.xlu0 %599, %v590
        %v601 = vpop.permute.xlu0 %600
        %604 = vset.pattern.permute.xlu0 0
        %605 = vperm.xlu0 %604, %v591
        %v606 = vpop.permute.xlu0 %605
        %609 = vset.pattern.permute.xlu0 0
        %610 = vperm.xlu0 %609, %v592
        %v611 = vpop.permute.xlu0 %610
        %v617 = vunpack.c.l.b16 %v585
        %v618 = vunpack.c.l.b16 %v586
        %v619 = vunpack.c.l.b16 %v587
        %v620 = vunpack.c.l.b16 %v588
        %v621 = vpack.c.b16 %v618, %v617
        %v622 = vpack.c.b16 %v620, %v619
        %v624 = vsel %vm523, %v621, 0
        %v627 = vsel %vm523, %v622, 0
        %629 = vmatprep.subr.bf16.mxu0 0
        %630 = vmatpush1.bf16.msra.mxu0 %v583
        %631 = vmatprep.subr.bf16.mxu0 0
        %632 = vmatpush1.bf16.msra.mxu0 %v584
        %633 = vmatprep.subr.bf16.mxu0 0
        %634 = vmatpush1.bf16.msra.mxu0 0
        %635 = vmatprep.subr.bf16.mxu0 0
        %636 = vmatpush1.bf16.msra.mxu0 0
        %637 = vmatprep.subr.bf16.mxu0 0
        %638 = vmatpush1.bf16.msra.mxu0 0
        %639 = vmatprep.subr.bf16.mxu0 0
        %640 = vmatpush1.bf16.msra.mxu0 0
        %641 = vmatprep.subr.bf16.mxu0 0
        %642 = vmatpush1.bf16.msra.mxu0 0
        %643 = vmatprep.subr.bf16.mxu0 0
        %644 = vmatpush1.bf16.msra.mxu0 0
        %645 = vmatprep.subr.bf16.mxu0 0
        %646 = vmatpush1.bf16.msra.mxu0 0
        %647 = vmatprep.subr.bf16.mxu0 0
        %648 = vmatpush1.bf16.msra.mxu0 0
        %649 = vmatprep.subr.bf16.mxu0 0
        %650 = vmatpush1.bf16.msra.mxu0 0
        %651 = vmatprep.subr.bf16.mxu0 0
        %652 = vmatpush1.bf16.msra.mxu0 0
        %653 = vmatprep.subr.bf16.mxu0 0
        %654 = vmatpush1.bf16.msra.mxu0 0
        %655 = vmatprep.subr.bf16.mxu0 0
        %656 = vmatpush1.bf16.msra.mxu0 0
        %657 = vmatprep.subr.bf16.mxu0 0
        %658 = vmatpush1.bf16.msra.mxu0 0
        %659 = vmatprep.subr.bf16.mxu0 0
        %660 = vmatpush1.bf16.msra.mxu0 0
        %661 = vmatprep.mubr.bf16.mxu0 0
        %662 = vmatmul.mubr.bf16.gmra.mrb[0].mxu0 %v624
        %v663 = vpop.f32.mrb[0].mxu0
        %v664 = vadd.f32 %v596, %v663
        %v665 = vpop.f32.mrb[0].mxu0
        %v666 = vpop.f32.mrb[0].mxu0
        %v667 = vadd.f32 %v601, %v666
        %v668 = vpop.f32.mrb[0].mxu0
        %669 = vmatprep.mubr.bf16.mxu0 0
        %670 = vmatmul.mubr.bf16.gmra.mrb[0].mxu0 %v627
        %v671 = vpop.f32.mrb[0].mxu0
        %v672 = vadd.f32 %v606, %v671
        %v673 = vpop.f32.mrb[0].mxu0
        %v674 = vpop.f32.mrb[0].mxu0
        %v675 = vadd.f32 %v611, %v674
        %v676 = vpop.f32.mrb[0].mxu0
        %677 = vdwg.mxu0
        %v678 = vpack.c.bf16 %v667, %v664
        %v679 = vpack.c.bf16 %v675, %v672
        %v680 = vld [vmem:[%s7] sm:$0xf]
        %v681 = vld [vmem:[%s7 + $0x4] sm:$0xf]
        %v682 = vld [vmem:[%s7 + $0x8] sm:$0xf]
        %v683 = vld [vmem:[%s7 + $0xc] sm:$0xf]
        %v684 = vld [vmem:[%s7 + $0x10] sm:$0xf]
        %v685 = vld [vmem:[%s7 + $0x14] sm:$0xf]
        %v686 = vld [vmem:[%s8] sm:$0xff]
        %v687 = vld [vmem:[%s8 + $0x8] sm:$0xff]
        %v688 = vld [vmem:[%s8 + $0x10] sm:$0xff]
        %v689 = vld [vmem:[%s8 + $0x18] sm:$0xff]
        %v690 = vld [vmem:[%s8 + $0x20] sm:$0xff]
        %v691 = vld [vmem:[%s8 + $0x28] sm:$0xff]
        %693 = vset.pattern.permute.xlu0 0
        %694 = vperm.xlu0 %693, %v686
        %v695 = vpop.permute.xlu0 %694
        %698 = vset.pattern.permute.xlu0 0
        %699 = vperm.xlu0 %698, %v687
        %v700 = vpop.permute.xlu0 %699
        %703 = vset.pattern.permute.xlu0 0
        %704 = vperm.xlu0 %703, %v688
        %v705 = vpop.permute.xlu0 %704
        %708 = vset.pattern.permute.xlu0 0
        %709 = vperm.xlu0 %708, %v689
        %v710 = vpop.permute.xlu0 %709
        %713 = vset.pattern.permute.xlu0 0
        %714 = vperm.xlu0 %713, %v690
        %v715 = vpop.permute.xlu0 %714
        %718 = vset.pattern.permute.xlu0 0
        %719 = vperm.xlu0 %718, %v691
        %v720 = vpop.permute.xlu0 %719
        %v728 = vunpack.c.l.b16 %v680
        %v729 = vunpack.c.l.b16 %v681
        %v730 = vunpack.c.l.b16 %v682
        %v731 = vunpack.c.l.b16 %v683
        %v732 = vunpack.c.l.b16 %v684
        %v733 = vunpack.c.l.b16 %v685
        %v734 = vpack.c.b16 %v729, %v728
        %v735 = vpack.c.b16 %v731, %v730
        %v736 = vpack.c.b16 %v733, %v732
        %v738 = vsel %vm523, %v734, 0
        %v741 = vsel %vm523, %v735, 0
        %v744 = vsel %vm523, %v736, 0
        %746 = vmatprep.subr.bf16.mxu0 0
        %747 = vmatpush1.bf16.msra.mxu0 %v678
        %748 = vmatprep.subr.bf16.mxu0 0
        %749 = vmatpush1.bf16.msra.mxu0 %v679
        %750 = vmatprep.subr.bf16.mxu0 0
        %751 = vmatpush1.bf16.msra.mxu0 0
        %752 = vmatprep.subr.bf16.mxu0 0
        %753 = vmatpush1.bf16.msra.mxu0 0
        %754 = vmatprep.subr.bf16.mxu0 0
        %755 = vmatpush1.bf16.msra.mxu0 0
        %756 = vmatprep.subr.bf16.mxu0 0
        %757 = vmatpush1.bf16.msra.mxu0 0
        %758 = vmatprep.subr.bf16.mxu0 0
        %759 = vmatpush1.bf16.msra.mxu0 0
        %760 = vmatprep.subr.bf16.mxu0 0
        %761 = vmatpush1.bf16.msra.mxu0 0
        %762 = vmatprep.subr.bf16.mxu0 0
        %763 = vmatpush1.bf16.msra.mxu0 0
        %764 = vmatprep.subr.bf16.mxu0 0
        %765 = vmatpush1.bf16.msra.mxu0 0
        %766 = vmatprep.subr.bf16.mxu0 0
        %767 = vmatpush1.bf16.msra.mxu0 0
        %768 = vmatprep.subr.bf16.mxu0 0
        %769 = vmatpush1.bf16.msra.mxu0 0
        %770 = vmatprep.subr.bf16.mxu0 0
        %771 = vmatpush1.bf16.msra.mxu0 0
        %772 = vmatprep.subr.bf16.mxu0 0
        %773 = vmatpush1.bf16.msra.mxu0 0
        %774 = vmatprep.subr.bf16.mxu0 0
        %775 = vmatpush1.bf16.msra.mxu0 0
        %776 = vmatprep.subr.bf16.mxu0 0
        %777 = vmatpush1.bf16.msra.mxu0 0
        %778 = vmatprep.mubr.bf16.mxu0 0
        %779 = vmatmul.mubr.bf16.gmra.mrb[0].mxu0 %v738
        %v780 = vpop.f32.mrb[0].mxu0
        %v781 = vadd.f32 %v695, %v780
        %v782 = vpop.f32.mrb[0].mxu0
        %v783 = vpop.f32.mrb[0].mxu0
        %v784 = vadd.f32 %v700, %v783
        %v785 = vpop.f32.mrb[0].mxu0
        %786 = vmatprep.mubr.bf16.mxu0 0
        %787 = vmatmul.mubr.bf16.gmra.mrb[0].mxu0 %v741
        %v788 = vpop.f32.mrb[0].mxu0
        %v789 = vadd.f32 %v705, %v788
        %v790 = vpop.f32.mrb[0].mxu0
        %v791 = vpop.f32.mrb[0].mxu0
        %v792 = vadd.f32 %v710, %v791
        %v793 = vpop.f32.mrb[0].mxu0
        %794 = vmatprep.mubr.bf16.mxu0 0
        %795 = vmatmul.mubr.bf16.gmra.mrb[0].mxu0 %v744
        %v796 = vpop.f32.mrb[0].mxu0
        %v797 = vadd.f32 %v715, %v796
        %v798 = vpop.f32.mrb[0].mxu0
        %v799 = vpop.f32.mrb[0].mxu0
        %v800 = vadd.f32 %v720, %v799
        %v801 = vpop.f32.mrb[0].mxu0
        %802 = vdwg.mxu0
        %v803 = vtanh.pop %v781
        %v804 = vtanh.pop %v784
        %v805 = vtanh.pop %v789
        %v806 = vtanh.pop %v792
        %v807 = vtanh.pop %v797
        %vm808 = vcmask 1044480
        %v809 = vsel %vm808, %v800, -inf
        %v810 = vrot.slane %v809, 4
        %v811 = vmax.f32 %v809, %v810
        %v812 = vrot.slane %v811, 2
        %v813 = vmax.f32 %v811, %v812
        %v814 = vrot.slane %v813, 1
        %v815 = vmax.f32 %v813, %v814
        %v816 = vsub.f32 %v800, %v815
        %v817 = vmul.f32 %v816, 1.442695
        %v818 = vpow.pop %v817
        %v819 = vsel %vm808, %v818, 0.0
        %v820 = vrot.slane %v819, 4
        %v821 = vadd.f32 %v819, %v820
        %v822 = vrot.slane %v821, 2
        %v823 = vadd.f32 %v821, %v822
        %v824 = vrot.slane %v823, 1
        %v825 = vadd.f32 %v823, %v824
        %v826 = vrcp.pop %v825
        %v827 = vmul.f32 %v818, %v826
        %v828 = vlaneseq
        %v829 = vshrl.u32 %v828, 7
        %v830 = vsub.s32 0, %v829
        %v831 = vrot.slane %v827, %v830
        %v832 = vmul.f32 %v831, %v803
        %v833 = vadd.f32 %v832, 0.0
        %v834 = vlaneseq
        %v835 = vshrl.u32 %v834, 7
        %v836 = vsub.s32 1, %v835
        %v837 = vrot.slane %v827, %v836
        %v838 = vmul.f32 %v837, %v804
        %v839 = vadd.f32 %v833, %v838
        %v840 = vlaneseq
        %v841 = vshrl.u32 %v840, 7
        %v842 = vsub.s32 2, %v841
        %v843 = vrot.slane %v827, %v842
        %v844 = vmul.f32 %v843, %v805
        %v845 = vadd.f32 %v839, %v844
        %v846 = vlaneseq
        %v847 = vshrl.u32 %v846, 7
        %v848 = vsub.s32 3, %v847
        %v849 = vrot.slane %v827, %v848
        %v850 = vmul.f32 %v849, %v806
        %v851 = vadd.f32 %v845, %v850
        %v852 = vlaneseq
        %v853 = vshrl.u32 %v852, 7
        %v854 = vsub.s32 4, %v853
        %v855 = vrot.slane %v827, %v854
        %v856 = vmul.f32 %v855, %v807
        %v857 = vadd.f32 %v851, %v856
        %858 = vst [vmem:[%s375] sm:$0xff] %v857
        %s859 = sand.u32 %s225, 1
        %s860 = scalar_lea.sflag [#allocation4], %s859
        %s861 = sand.u32 %s225, 1
        %s862 = smul.addr %s861, 8
        %s863 = scalar_lea.vmem [#allocation3], %s862
        // Predicated region
        $region98: #{tpu_custom_call.1} parent=92 // pred_check
          %p864 = pneg %p235
        $region99: #{tpu_custom_call.1} parent=92 // pred_check_branch
          %866 = sbr.rel (%p864) target = $region101
        $region100: #{tpu_custom_call.1} parent=92 // pred_region
          %s868 = ssub.s32 128, 128
          %869 = vsyncadd %s860, %s868
          %s870 = smul.addr %s23, 128
          %s871 = scalar_lea.hbm %s9, %s870
          %s873 = sshll.u32 %s863, 4
          %s874 = int_to_ptr.vmem [resolvable:$true] %s873
          %876 = dma.vmem_to_hbm [thread:$0]  %s874, 128, %s871, %s860
        $region101: #{tpu_custom_call.1} parent=92 // pred_fallthru
          _
      $region93: #{tpu_custom_call.1} parent=5 // pred_fallthru
        _
      %p877 = scmp.le.s32.totalorder 2, %s18
      // Predicated region
      $region102: #{tpu_custom_call.1} parent=5 // pred_check
        %p878 = pneg %p877
      $region103: #{tpu_custom_call.1} parent=5 // pred_check_branch
        %880 = sbr.rel (%p878) target = $region105
      $region104: #{tpu_custom_call.1} parent=5 // pred_region
        %s881 = ssub.s32 %s18, 2
        // Predicated region
        $region106: #{tpu_custom_call.1} parent=104 // pred_check
          %p882 = pneg %p241
        $region107: #{tpu_custom_call.1} parent=104 // pred_check_branch
          %884 = sbr.rel (%p882) target = $region109
        $region108: #{tpu_custom_call.1} parent=104 // pred_region
          %s885 = sand.u32 %s226, 1
          %s886 = scalar_lea.sflag [#allocation4], %s885
          %s887 = sand.u32 %s226, 1
          %s888 = smul.addr %s887, 8
          %s889 = scalar_lea.vmem [#allocation3], %s888
          %890 = dma.done %s886, 128
        $region109: #{tpu_custom_call.1} parent=104 // pred_fallthru
          _
      $region105: #{tpu_custom_call.1} parent=5 // pred_fallthru
        _
    $region6: #{tpu_custom_call.1} parent=1 // loop_footer
      %s22 = sadd.s32 1, %s18
    $region7: #{tpu_custom_call.1} parent=1 // loop_footer_branch
      %17 = sbr.rel target = $region3
    $region8: #{tpu_custom_call.1} parent=1 // loop_exit
      _
    %891 = vsyncpa [#allocation4], 1
    %s892 = scalar_lea.sflag [#allocation4], 1
    %893 = vsyncpa %s892, 1

</llo_original>
